<compile_context>
chip_gen: v5e
topology: v5e:2x2
jax: 0.10.0
libtpu: 0.0.40
codegen_flags: <defaults>
</compile_context>

<pallas_src>
import functools

import jax
import jax.numpy as jnp
from jax import lax
from jax.experimental import pallas as pl
from jax.experimental.pallas import tpu as pltpu

EPS = 1e-6

# murmur3 fmix32 constants as signed int32 bit patterns (wrapping int32 math is
# bit-identical to uint32 math and int32 is the safest vector int dtype).
_GOLDEN = -1640531535     # 0x9E3779B1
_FMIX_C1 = -2048144789    # 0x85EBCA6B
_FMIX_C2 = -1028477387    # 0xC2B2AE35


def _residual_kernel(seed_ref, x_ref, ab_ref, w_ref, b_ref, o_ref, *,
                     dropout_p, train, d_valid):
    x = x_ref[...]                                   # (tm, dp) f32
    tm, dp = x.shape

    # --- LayerNormalization (additive variant, unbiased std) ---
    mean = jnp.sum(x, axis=-1, keepdims=True) * jnp.float32(1.0 / d_valid)
    xc = x - mean
    if d_valid != dp:                                # mask padded feature lanes
        lane = lax.broadcasted_iota(jnp.int32, (tm, dp), 1)
        xc = jnp.where(lane < d_valid, xc, 0.0)
    var = jnp.sum(xc * xc, axis=-1, keepdims=True) * jnp.float32(
        1.0 / (d_valid - 1))
    inv = 1.0 / (jnp.sqrt(var) + EPS)                # (tm, 1) column only
    y = ab_ref[...] + xc * inv                       # alpha + beta pre-fused

    # --- sublayer: Linear(d_model -> d_model), bf16 operands on the MXU ---
    h = jnp.dot(y.astype(jnp.bfloat16), w_ref[...],
                preferred_element_type=jnp.float32) + b_ref[...]

    # --- dropout (training mode), integer-threshold Bernoulli mask ---
    if train and dropout_p > 0.0:
        r = lax.broadcasted_iota(jnp.int32, (tm, dp), 0) + pl.program_id(0) * tm
        c = lax.broadcasted_iota(jnp.int32, (tm, dp), 1)
        z = r * jnp.int32(dp) + c                    # globally unique counter
        z = z ^ (seed_ref[0] * jnp.int32(_GOLDEN))   # mix in the seed
        z = z ^ lax.shift_right_logical(z, jnp.int32(16))
        z = z * jnp.int32(_FMIX_C1)
        z = z ^ lax.shift_right_logical(z, jnp.int32(13))
        z = z * jnp.int32(_FMIX_C2)
        z = z ^ lax.shift_right_logical(z, jnp.int32(16))
        thr = min(int(round(dropout_p * 2147483648.0)), 2147483647)
        keep = (z & jnp.int32(0x7FFFFFFF)) >= jnp.int32(thr)
        h = jnp.where(keep, h * jnp.float32(1.0 / (1.0 - dropout_p)),
                      jnp.float32(0.0))

    # --- residual connection ---
    o_ref[...] = x + h


def _round_up(n, m):
    return (n + m - 1) // m * m


def residual_connection(x, alpha, beta, w, b, seed, *,
                        dropout_p=0.1, train=True, tm=256):
    """x: (B, S, D) fp32; sublayer = Linear(D, D) with weights (w, b)."""
    B, S, D = x.shape
    rows = B * S

    # Lane-dense feature padding (last dim -> multiple of 128).
    dp = _round_up(D, 128)
    # Row tile: multiple of 8, capped at the (padded) row count; rows padded
    # to a multiple of the tile so any shape works (no divisibility assert).
    tm = _round_up(max(int(tm), 8), 8)
    tm = min(tm, _round_up(rows, 8))
    rows_p = _round_up(rows, tm)

    x2 = jnp.pad(x.reshape(rows, D).astype(jnp.float32),
                 ((0, rows_p - rows), (0, dp - D)))
    ab = jnp.pad((alpha + beta).astype(jnp.float32).reshape(1, D),
                 ((0, 0), (0, dp - D)))
    w2 = jnp.pad(w.astype(jnp.float32),
                 ((0, dp - D), (0, dp - D))).astype(jnp.bfloat16)
    b2 = jnp.pad(b.astype(jnp.float32).reshape(1, D), ((0, 0), (0, dp - D)))
    seed_arr = jnp.asarray([seed], dtype=jnp.int32)

    kernel = functools.partial(_residual_kernel, dropout_p=float(dropout_p),
                               train=bool(train), d_valid=int(D))

    out = pl.pallas_call(
        kernel,
        out_shape=jax.ShapeDtypeStruct((rows_p, dp), jnp.float32),
        grid=(rows_p // tm,),
        in_specs=[
            pl.BlockSpec(memory_space=pltpu.MemorySpace.SMEM),   # seed scalar
            pl.BlockSpec((tm, dp), lambda i: (i, 0)),            # x rows
            pl.BlockSpec((1, dp), lambda i: (0, 0)),             # alpha + beta
            pl.BlockSpec((dp, dp), lambda i: (0, 0)),            # weight (bf16)
            pl.BlockSpec((1, dp), lambda i: (0, 0)),             # linear bias
        ],
        out_specs=pl.BlockSpec((tm, dp), lambda i: (i, 0)),
        compiler_params=pltpu.CompilerParams(
            dimension_semantics=("parallel",)),   # row tiles are independent
    )(seed_arr, x2, ab, w2, b2)

    return out[:rows, :D].reshape(B, S, D)


def _reference(x, alpha, beta, w, b):
    mean = jnp.mean(x, axis=-1, keepdims=True)
    std = jnp.std(x, axis=-1, keepdims=True, ddof=1)
    y = alpha + (x - mean) / (std + EPS) + beta
    return x + (y @ w + b)


if __name__ == "__main__":
    B, S, D = 2, 8, 32  # batch, seq_length, d_model
    key = jax.random.PRNGKey(0)
    kx, kw, kb = jax.random.split(key, 3)

    x = jax.random.normal(kx, (B, S, D), dtype=jnp.float32)

    # LayerNormalization params, as in __init__: ones / zeros.
    alpha = jnp.ones((D,), dtype=jnp.float32)
    beta = jnp.zeros((D,), dtype=jnp.float32)

    # Deterministic synthetic sublayer (Linear d_model -> d_model).
    w = jax.random.normal(kw, (D, D), dtype=jnp.float32) / jnp.sqrt(D)
    b = jax.random.normal(kb, (D,), dtype=jnp.float32) * 0.01

    # Deterministic sanity check (dropout off; bf16 matmul -> loose tolerance).
    out0 = residual_connection(x, alpha, beta, w, b, seed=0,
                               dropout_p=0.0, train=False)
    jax.block_until_ready(out0)
    ref0 = _reference(x, alpha, beta, w, b)
    assert out0.shape == (B, S, D)
    assert bool(jnp.all(jnp.isfinite(out0)))
    assert bool(jnp.allclose(out0, ref0, atol=1e-1, rtol=1e-1))

    # Training-mode call with dropout.
    out = residual_connection(x, alpha, beta, w, b, seed=1234,
                              dropout_p=0.1, train=True)
    jax.block_until_ready(out)
    assert out.shape == (B, S, D)
    assert bool(jnp.all(jnp.isfinite(out)))
    print("KERNEL_OK")
</pallas_src>

<mosaic_0001>
module attributes {stable_mosaic.version = 11 : i64} {
  func.func @_residual_kernel(%arg0: i32, %arg1: memref<1xi32, #tpu.memory_space<smem>>, %arg2: memref<16x128xf32, #tpu.memory_space<vmem>>, %arg3: memref<1x128xf32, #tpu.memory_space<vmem>>, %arg4: memref<128x128xbf16, #tpu.memory_space<vmem>>, %arg5: memref<1x128xf32, #tpu.memory_space<vmem>>, %arg6: memref<16x128xf32, #tpu.memory_space<vmem>>) attributes {dimension_semantics = [#tpu.dimension_semantics<parallel>], iteration_bounds = array<i64: 1>, scalar_prefetch = 0 : i64, scratch_operands = 0 : i64, tpu.core_type = #tpu.core_type<tc>, window_params = [{transform_indices = @transform_0, window_bounds = array<i64: 1>}, {transform_indices = @transform_1, window_bounds = array<i64: 16, 128>}, {pipeline_mode = #tpu.pipeline_mode<synchronous>, transform_indices = @transform_2, window_bounds = array<i64: 1, 128>}, {pipeline_mode = #tpu.pipeline_mode<synchronous>, transform_indices = @transform_3, window_bounds = array<i64: 128, 128>}, {pipeline_mode = #tpu.pipeline_mode<synchronous>, transform_indices = @transform_4, window_bounds = array<i64: 1, 128>}, {transform_indices = @transform_5, window_bounds = array<i64: 16, 128>}]} {
    %c0 = arith.constant 0 : index
    %c0_0 = arith.constant 0 : index
    %0 = vector.load %arg2[%c0, %c0_0] : memref<16x128xf32, #tpu.memory_space<vmem>>, vector<16x128xf32>
    %cst = arith.constant dense<0.000000e+00> : vector<16xf32>
    %1 = vector.multi_reduction <add>, %0, %cst [1] : vector<16x128xf32> to vector<16xf32>
    %2 = vector.shape_cast %1 : vector<16xf32> to vector<16x1xf32>
    %cst_1 = arith.constant 3.125000e-02 : f32
    %3 = vector.broadcast %cst_1 : f32 to vector<16x1xf32>
    %4 = arith.mulf %2, %3 : vector<16x1xf32>
    %5 = vector.broadcast %4 : vector<16x1xf32> to vector<16x128xf32>
    %6 = arith.subf %0, %5 : vector<16x128xf32>
    %7 = tpu.iota {dimensions = array<i32: 1>} : vector<16x128xi32>
    %c32_i32 = arith.constant 32 : i32
    %8 = vector.broadcast %c32_i32 : i32 to vector<16x128xi32>
    %9 = arith.cmpi slt, %7, %8 : vector<16x128xi32>
    %cst_2 = arith.constant 0.000000e+00 : f32
    %10 = vector.broadcast %cst_2 : f32 to vector<16x128xf32>
    %11 = arith.select %9, %6, %10 : vector<16x128xi1>, vector<16x128xf32>
    %12 = arith.mulf %11, %11 : vector<16x128xf32>
    %cst_3 = arith.constant dense<0.000000e+00> : vector<16xf32>
    %13 = vector.multi_reduction <add>, %12, %cst_3 [1] : vector<16x128xf32> to vector<16xf32>
    %14 = vector.shape_cast %13 : vector<16xf32> to vector<16x1xf32>
    %cst_4 = arith.constant 0.0322580636 : f32
    %15 = vector.broadcast %cst_4 : f32 to vector<16x1xf32>
    %16 = arith.mulf %14, %15 : vector<16x1xf32>
    %17 = math.sqrt %16 : vector<16x1xf32>
    %cst_5 = arith.constant 9.99999997E-7 : f32
    %18 = vector.broadcast %cst_5 : f32 to vector<16x1xf32>
    %19 = arith.addf %17, %18 : vector<16x1xf32>
    %cst_6 = arith.constant 1.000000e+00 : f32
    %20 = vector.broadcast %cst_6 : f32 to vector<16x1xf32>
    %21 = arith.divf %20, %19 : vector<16x1xf32>
    %c0_7 = arith.constant 0 : index
    %c0_8 = arith.constant 0 : index
    %22 = vector.load %arg3[%c0_7, %c0_8] : memref<1x128xf32, #tpu.memory_space<vmem>>, vector<1x128xf32>
    %23 = vector.broadcast %21 : vector<16x1xf32> to vector<16x128xf32>
    %24 = arith.mulf %11, %23 : vector<16x128xf32>
    %25 = vector.broadcast %22 : vector<1x128xf32> to vector<16x128xf32>
    %26 = arith.addf %25, %24 : vector<16x128xf32>
    %27 = arith.truncf %26 : vector<16x128xf32> to vector<16x128xbf16>
    %c0_9 = arith.constant 0 : index
    %c0_10 = arith.constant 0 : index
    %28 = vector.load %arg4[%c0_9, %c0_10] : memref<128x128xbf16, #tpu.memory_space<vmem>>, vector<128x128xbf16>
    %cst_11 = arith.constant dense<0.000000e+00> : vector<16x128xf32>
    %29 = tpu.matmul %27, %28, %cst_11 {dimension_numbers = #tpu.dot_dimension_numbers<[1], [0], [0], [1], [0, 0, 1, 1], [], []>} : vector<16x128xbf16>, vector<128x128xbf16>, vector<16x128xf32> -> vector<16x128xf32>
    %c0_12 = arith.constant 0 : index
    %c0_13 = arith.constant 0 : index
    %30 = vector.load %arg5[%c0_12, %c0_13] : memref<1x128xf32, #tpu.memory_space<vmem>>, vector<1x128xf32>
    %31 = vector.broadcast %30 : vector<1x128xf32> to vector<16x128xf32>
    %32 = arith.addf %29, %31 : vector<16x128xf32>
    %33 = arith.addf %0, %32 : vector<16x128xf32>
    %c0_14 = arith.constant 0 : index
    %c0_15 = arith.constant 0 : index
    %34 = vector.load %arg6[%c0_14, %c0_15] : memref<16x128xf32, #tpu.memory_space<vmem>>, vector<16x128xf32>
    tpu.vector_store %arg6[%c0_14, %c0_15], %33 {strides = array<i32>} : memref<16x128xf32, #tpu.memory_space<vmem>>, vector<16x128xf32>,
    return
  }
  func.func @transform_0(%arg0: i32) -> i32 {
    %c0_i32 = arith.constant 0 : i32
    %c0_i32_0 = arith.constant 0 : i32
    return %c0_i32 : i32
  }
  func.func @transform_1(%arg0: i32) -> (i32, i32) {
    %c0_i32 = arith.constant 0 : i32
    %c0_i32_0 = arith.constant 0 : i32
    return %arg0, %c0_i32 : i32, i32
  }
  func.func @transform_2(%arg0: i32) -> (i32, i32) {
    %c0_i32 = arith.constant 0 : i32
    %c0_i32_0 = arith.constant 0 : i32
    %c0_i32_1 = arith.constant 0 : i32
    return %c0_i32, %c0_i32_0 : i32, i32
  }
  func.func @transform_3(%arg0: i32) -> (i32, i32) {
    %c0_i32 = arith.constant 0 : i32
    %c0_i32_0 = arith.constant 0 : i32
    %c0_i32_1 = arith.constant 0 : i32
    return %c0_i32, %c0_i32_0 : i32, i32
  }
  func.func @transform_4(%arg0: i32) -> (i32, i32) {
    %c0_i32 = arith.constant 0 : i32
    %c0_i32_0 = arith.constant 0 : i32
    %c0_i32_1 = arith.constant 0 : i32
    return %c0_i32, %c0_i32_0 : i32, i32
  }
  func.func @transform_5(%arg0: i32) -> (i32, i32) {
    %c0_i32 = arith.constant 0 : i32
    %c0_i32_0 = arith.constant 0 : i32
    return %arg0, %c0_i32 : i32, i32
  }
}

</mosaic_0001>

<llo_original>
// kernel: tpu_custom_call.1
$region0: #{tpu_custom_call.1}
  #allocation0 [shape = 'u32[]', space=smem, size = 0x4, offset = 0x4, fixed_abs, tag = 'smem constant byte address 0x4 - core index']
  #allocation1 [shape = 'u32[72,128]{1,0:T(1,128)}', space=vmem, size = 0x9000, scoped, tag = 'internal scratch']
  #allocation2 [shape = 's32[1]{0:T(128)S(6)}', space=smem, size = 0x200, scoped, tag = 'scoped memory for tpu_custom_call.1']
  %s0 = inlined_call_operand.<no memory space> [shape: s32[1], index: 0, kind: input, shape index: {}]
  %s1 = inlined_call_operand.hbm [shape: f32[16,128], index: 1, kind: input, shape index: {}]
  %s2 = inlined_call_operand.vmem [shape: f32[1,128], index: 2, kind: input, shape index: {}]
  %s3 = inlined_call_operand.hbm [shape: bf16[128,128], index: 3, kind: input, shape index: {}]
  %s4 = inlined_call_operand.vmem [shape: f32[1,128], index: 4, kind: input, shape index: {}]
  %s5 = inlined_call_operand.hbm [shape: f32[16,128], index: 5, kind: output, shape index: {}]
  %s6 = sld [smem:[#allocation0]]
  $region38: #{tpu_custom_call.1} parent=0
    _
  %s8 = ssub.s32 1, %s6
  %s9 = scalar_select 0, %s8, %s6
  %10 = sst [smem:[#allocation2]] %s0
  $region1: #{tpu_custom_call.1} parent=0
    #allocation3 [shape = 'u8[8192]{0}', space=vmem, size = 0x2000, scoped, tag = 'input window, operand 1, single buffered']
    #allocation4 [shape = 's32[1]{0}', space=sflag, size = 0x4, scoped, tag = 'scoped memory for tpu_custom_call.1']
    #allocation5 [shape = 's32[1]{0}', space=sflag, size = 0x4, scoped, tag = 'scoped memory for tpu_custom_call.1']
    #allocation6 [shape = 'u8[32768]{0}', space=vmem, size = 0x8000, scoped, tag = 'input window, operand 3, single buffered']
    #allocation7 [shape = 's32[1]{0}', space=sflag, size = 0x4, scoped, tag = 'scoped memory for tpu_custom_call.1']
    #allocation8 [shape = 'u8[8192]{0}', space=vmem, size = 0x2000, scoped, tag = 'output window, operand 0, single buffered']
    %11 = vsyncpa [#allocation4], 0
    %12 = vsyncpa [#allocation7], 0
    %13 = vsyncpa [#allocation5], 0
    // Predicated region
    $region2: #{tpu_custom_call.1} parent=1 // pred_check
      _
    $region3: #{tpu_custom_call.1} parent=1 // pred_check_branch
      %15 = sbr.rel (0) target = $region5
    $region4: #{tpu_custom_call.1} parent=1 // pred_region
      _
    $region5: #{tpu_custom_call.1} parent=1 // pred_fallthru
      _
    // Predicated region
    $region6: #{tpu_custom_call.1} parent=1 // pred_check
      _
    $region7: #{tpu_custom_call.1} parent=1 // pred_check_branch
      %17 = sbr.rel (0) target = $region9
    $region8: #{tpu_custom_call.1} parent=1 // pred_region
      %19 = vsyncadd [#allocation4], 0
      %s20 = sshll.u32 %s1, 4
      %s21 = int_to_ptr.hbm [resolvable:$true] %s20
      %s22 = sshll.u32 [#allocation3], 4
      %s23 = int_to_ptr.vmem [resolvable:$true] %s22
      %28 = dma.hbm_to_vmem [thread:$0]  %s21, 256, %s23, [#allocation4], 128, 128, 8
    $region9: #{tpu_custom_call.1} parent=1 // pred_fallthru
      _
    // Predicated region
    $region10: #{tpu_custom_call.1} parent=1 // pred_check
      _
    $region11: #{tpu_custom_call.1} parent=1 // pred_check_branch
      %30 = sbr.rel (0) target = $region13
    $region12: #{tpu_custom_call.1} parent=1 // pred_region
      _
    $region13: #{tpu_custom_call.1} parent=1 // pred_fallthru
      _
    // Predicated region
    $region14: #{tpu_custom_call.1} parent=1 // pred_check
      _
    $region15: #{tpu_custom_call.1} parent=1 // pred_check_branch
      %32 = sbr.rel (0) target = $region17
    $region16: #{tpu_custom_call.1} parent=1 // pred_region
      %34 = vsyncadd [#allocation7], 0
      %s35 = sshll.u32 %s3, 4
      %s36 = int_to_ptr.hbm [resolvable:$true] %s35
      %s37 = sshll.u32 [#allocation6], 4
      %s38 = int_to_ptr.vmem [resolvable:$true] %s37
      %43 = dma.hbm_to_vmem [thread:$0]  %s36, 1024, %s38, [#allocation7], 64, 64, 4
    $region17: #{tpu_custom_call.1} parent=1 // pred_fallthru
      _
    // Predicated region
    $region18: #{tpu_custom_call.1} parent=1 // pred_check
      _
    $region19: #{tpu_custom_call.1} parent=1 // pred_check_branch
      %45 = sbr.rel (0) target = $region21
    $region20: #{tpu_custom_call.1} parent=1 // pred_region
      _
    $region21: #{tpu_custom_call.1} parent=1 // pred_fallthru
      _
    // Predicated region
    $region22: #{tpu_custom_call.1} parent=1 // pred_check
      _
    $region23: #{tpu_custom_call.1} parent=1 // pred_check_branch
      %47 = sbr.rel (0) target = $region25
    $region24: #{tpu_custom_call.1} parent=1 // pred_region
      %49 = dma.done [#allocation4], 256
    $region25: #{tpu_custom_call.1} parent=1 // pred_fallthru
      _
    // Predicated region
    $region26: #{tpu_custom_call.1} parent=1 // pred_check
      _
    $region27: #{tpu_custom_call.1} parent=1 // pred_check_branch
      %51 = sbr.rel (0) target = $region29
    $region28: #{tpu_custom_call.1} parent=1 // pred_region
      %53 = dma.done [#allocation7], 1024
    $region29: #{tpu_custom_call.1} parent=1 // pred_fallthru
      _
    %v54 = vld [vmem:[#allocation3] sm:$0xff]
    %v55 = vld [vmem:[#allocation3 + $0x8] sm:$0xff]
    %56 = vadd.xlane.f32.xlu0 %v54
    %v57 = vpop.xlane.xlu0 %56
    %58 = vadd.xlane.f32.xlu0 %v55
    %v59 = vpop.xlane.xlu0 %58
    %v60 = vmul.f32 %v57, 0.03125
    %v61 = vmul.f32 %v59, 0.03125
    %v62 = vsub.f32 %v54, %v60
    %v63 = vsub.f32 %v55, %v61
    %v64 = vlaneseq
    %v65 = vand.u32 %v64, 127
    %vm66 = vcmp.lt.s32.totalorder %v65, 32
    %v67 = vsel %vm66, %v62, 0.0
    %v68 = vsel %vm66, %v63, 0.0
    %v69 = vmul.f32 %v67, %v67
    %v70 = vmul.f32 %v68, %v68
    %71 = vadd.xlane.f32.xlu0 %v69
    %v72 = vpop.xlane.xlu0 %71
    %73 = vadd.xlane.f32.xlu0 %v70
    %v74 = vpop.xlane.xlu0 %73
    %v75 = vmul.f32 %v72, 0.032258064
    %v76 = vmul.f32 %v74, 0.032258064
    %v77 = vrsqrt.pop %v75
    %v78 = vmul.f32 %v77, %v75
    %v79 = vmul.f32 %v78, %v77
    %v80 = vmul.f32 0.5, %v79
    %v81 = vsub.f32 1.5, %v80
    %v82 = vmul.f32 %v77, %v81
    %v83 = vmul.f32 %v75, %v82
    %vm84 = vcmp.eq.f32.partialorder %v75, inf
    %v85 = vsel %vm84, %v75, %v83
    %vm86 = vcmp.eq.f32.partialorder %v75, 0.0
    %v87 = vand.u32 %v75, 2147483648
    %v88 = vsel %vm86, %v87, %v85
    %v89 = vrsqrt.pop %v76
    %v90 = vmul.f32 %v89, %v76
    %v91 = vmul.f32 %v90, %v89
    %v92 = vmul.f32 0.5, %v91
    %v93 = vsub.f32 1.5, %v92
    %v94 = vmul.f32 %v89, %v93
    %v95 = vmul.f32 %v76, %v94
    %vm96 = vcmp.eq.f32.partialorder %v76, inf
    %v97 = vsel %vm96, %v76, %v95
    %vm98 = vcmp.eq.f32.partialorder %v76, 0.0
    %v99 = vand.u32 %v76, 2147483648
    %v100 = vsel %vm98, %v99, %v97
    %v101 = vadd.f32 %v88, 1e-06
    %v102 = vadd.f32 %v100, 1e-06
    %v103 = vrcp.pop %v101
    %v104 = vmul.f32 %v101, %v103
    %v105 = vsub.f32 1.0, %v104
    %v106 = vmul.f32 %v103, %v105
    %v107 = vadd.f32 %v103, %v106
    %vm108 = vweird.f32 %v101
    %vm109 = vweird.f32 %v103
    %vm110 = vmor %vm108, %vm109
    %v111 = vsel %vm110, %v103, %v107
    %v112 = vand.u32 2147483647, %v101
    %vm113 = vcmp.eq.f32.partialorder %v112, 8.507059e+37
    %v114 = vand.u32 %v101, 2147483648
    %v115 = vor.u32 1.1754944e-38, %v114
    %v116 = vsel %vm113, %v115, %v111
    %v117 = vmul.f32 1.0, %v116
    %v118 = vrcp.pop %v102
    %v119 = vmul.f32 %v102, %v118
    %v120 = vsub.f32 1.0, %v119
    %v121 = vmul.f32 %v118, %v120
    %v122 = vadd.f32 %v118, %v121
    %vm123 = vweird.f32 %v102
    %vm124 = vweird.f32 %v118
    %vm125 = vmor %vm123, %vm124
    %v126 = vsel %vm125, %v118, %v122
    %v127 = vand.u32 2147483647, %v102
    %vm128 = vcmp.eq.f32.partialorder %v127, 8.507059e+37
    %v129 = vand.u32 %v102, 2147483648
    %v130 = vor.u32 1.1754944e-38, %v129
    %v131 = vsel %vm128, %v130, %v126
    %v132 = vmul.f32 1.0, %v131
    %v133 = vld [vmem:[%s2] sm:$0x1]
    %v134 = vmul.f32 %v67, %v117
    %v135 = vmul.f32 %v68, %v132
    %v137 = vperm.slane %v133, 0
    %v139 = vadd.f32 %v137, %v134
    %v140 = vadd.f32 %v137, %v135
    %v141 = vpack.c.bf16 %v140, %v139
    %v142 = vld [vmem:[#allocation6] sm:$0xf]
    %v143 = vld [vmem:[#allocation6 + $0x4] sm:$0xf]
    %v144 = vld [vmem:[#allocation6 + $0x8] sm:$0xf]
    %v145 = vld [vmem:[#allocation6 + $0xc] sm:$0xf]
    %v146 = vld [vmem:[#allocation6 + $0x10] sm:$0xf]
    %v147 = vld [vmem:[#allocation6 + $0x14] sm:$0xf]
    %v148 = vld [vmem:[#allocation6 + $0x18] sm:$0xf]
    %v149 = vld [vmem:[#allocation6 + $0x1c] sm:$0xf]
    %v150 = vld [vmem:[#allocation6 + $0x20] sm:$0xf]
    %v151 = vld [vmem:[#allocation6 + $0x24] sm:$0xf]
    %v152 = vld [vmem:[#allocation6 + $0x28] sm:$0xf]
    %v153 = vld [vmem:[#allocation6 + $0x2c] sm:$0xf]
    %v154 = vld [vmem:[#allocation6 + $0x30] sm:$0xf]
    %v155 = vld [vmem:[#allocation6 + $0x34] sm:$0xf]
    %v156 = vld [vmem:[#allocation6 + $0x38] sm:$0xf]
    %v157 = vld [vmem:[#allocation6 + $0x3c] sm:$0xf]
    %v158 = vld [vmem:[%s4] sm:$0x1]
    %v160 = vperm.slane %v158, 0
    %v178 = vunpack.c.l.b16 %v142
    %v179 = vunpack.c.l.b16 %v143
    %v180 = vunpack.c.l.b16 %v144
    %v181 = vunpack.c.l.b16 %v145
    %v182 = vunpack.c.l.b16 %v146
    %v183 = vunpack.c.l.b16 %v147
    %v184 = vunpack.c.l.b16 %v148
    %v185 = vunpack.c.l.b16 %v149
    %v186 = vunpack.c.l.b16 %v150
    %v187 = vunpack.c.l.b16 %v151
    %v188 = vunpack.c.l.b16 %v152
    %v189 = vunpack.c.l.b16 %v153
    %v190 = vunpack.c.l.b16 %v154
    %v191 = vunpack.c.l.b16 %v155
    %v192 = vunpack.c.l.b16 %v156
    %v193 = vunpack.c.l.b16 %v157
    %v194 = vpack.c.b16 %v179, %v178
    %v195 = vpack.c.b16 %v181, %v180
    %v196 = vpack.c.b16 %v183, %v182
    %v197 = vpack.c.b16 %v185, %v184
    %v198 = vpack.c.b16 %v187, %v186
    %v199 = vpack.c.b16 %v189, %v188
    %v200 = vpack.c.b16 %v191, %v190
    %v201 = vpack.c.b16 %v193, %v192
    %210 = vmatpush.bf16.msra.mxu0 %v201
    %211 = vmatpush.bf16.msra.mxu0 %v200
    %212 = vmatpush.bf16.msra.mxu0 %v199
    %213 = vmatpush.bf16.msra.mxu0 %v198
    %214 = vmatpush.bf16.msra.mxu0 %v197
    %215 = vmatpush.bf16.msra.mxu0 %v196
    %216 = vmatpush.bf16.msra.mxu0 %v195
    %217 = vmatpush.bf16.msra.mxu0 %v194
    %218 = vmatmul.bf16.gmra.mxu0 %v141
    %v219 = vpop.f32.mrf.mxu0
    %v220 = vadd.f32 %v160, %v219
    %v221 = vpop.f32.mrf.mxu0
    %v222 = vadd.f32 %v160, %v221
    %223 = vdwg.mxu0
    %v224 = vadd.f32 %v54, %v220
    %v225 = vadd.f32 %v55, %v222
    %226 = vst [vmem:[#allocation8] sm:$0xff] %v224
    %227 = vst [vmem:[#allocation8 + $0x8] sm:$0xff] %v225
    // Predicated region
    $region30: #{tpu_custom_call.1} parent=1 // pred_check
      _
    $region31: #{tpu_custom_call.1} parent=1 // pred_check_branch
      %229 = sbr.rel (0) target = $region33
    $region32: #{tpu_custom_call.1} parent=1 // pred_region
      %231 = vsyncadd [#allocation5], 0
      %s232 = sshll.u32 [#allocation8], 4
      %s233 = int_to_ptr.vmem [resolvable:$true] %s232
      %s234 = sshll.u32 %s5, 4
      %s235 = int_to_ptr.hbm [resolvable:$true] %s234
      %240 = dma.vmem_to_hbm [thread:$0]  %s233, 256, %s235, [#allocation5], 128, 128, 8
    $region33: #{tpu_custom_call.1} parent=1 // pred_fallthru
      _
    // Predicated region
    $region34: #{tpu_custom_call.1} parent=1 // pred_check
      _
    $region35: #{tpu_custom_call.1} parent=1 // pred_check_branch
      %242 = sbr.rel (0) target = $region37
    $region36: #{tpu_custom_call.1} parent=1 // pred_region
      %244 = dma.done [#allocation5], 256
    $region37: #{tpu_custom_call.1} parent=1 // pred_fallthru
      _
    %245 = vsyncpa [#allocation4], 1
    %246 = vsyncpa [#allocation7], 1
    %247 = vsyncpa [#allocation5], 1

</llo_original>
